<compile_context>
chip_gen: v7x
topology: tpu7x:2x2x1
jax: 0.10.0
libtpu: 0.0.40
codegen_flags: <defaults>
</compile_context>

<pallas_src>
import functools

import jax
import jax.numpy as jnp
from jax.experimental import pallas as pl
from jax.experimental.pallas import tpu as pltpu

_T = 3.0
_EPS = 1e-7


def _round_up(x, m):
    return ((x + m - 1) // m) * m


def _kl_loss_kernel(pred_ref, label_ref, out_ref, *, n_total, tn, scale, exact_eps_log):
    """One (tn, C) row tile: class-axis KL reduce, accumulate into resident out block."""
    inv_t = 1.0 / _T
    tile = pl.program_id(0)
    n_tiles = pl.num_programs(0)

    # ---- init the resident, lane-dense output block at the start of the sweep ----
    @pl.when(tile == 0)
    def _():
        out_ref[...] = jnp.zeros_like(out_ref)

    p = pred_ref[...].astype(jnp.float32) * inv_t
    q = label_ref[...].astype(jnp.float32) * inv_t

    # log_softmax(pred / T) along the class axis.
    p_shift = p - jnp.max(p, axis=1, keepdims=True)
    log_predict = p_shift - jnp.log(jnp.sum(jnp.exp(p_shift), axis=1, keepdims=True))

    # softmax(label / T) (+ eps, matching the torch code).
    q_shift = q - jnp.max(q, axis=1, keepdims=True)
    q_exp = jnp.exp(q_shift)
    q_sum = jnp.sum(q_exp, axis=1, keepdims=True)

    if exact_eps_log:
        # Bit-faithful to PyTorch: log is taken of (softmax + eps).
        target = q_exp * (1.0 / q_sum) + _EPS
        log_target = jnp.log(target)
    else:
        # Compute-bound variant: 2 full-width transcendentals instead of 3.
        # eps is kept only on the multiplicand; log(target) ~ log_softmax(q).
        target = q_exp * pl.reciprocal(q_sum, approx=True) + _EPS
        log_target = q_shift - jnp.log(q_sum)

    # Class-axis reduce only; the cross-row reduce collapses to a per-tile scalar.
    kl_row = jnp.sum(target * (log_target - log_predict), axis=1, keepdims=True)

    # Mask rows of the (possibly ragged) trailing block — replaces host-side padding.
    row_ids = tile * tn + jax.lax.broadcasted_iota(jnp.int32, (tn, 1), 0)
    kl_row = jnp.where(row_ids < n_total, kl_row, 0.0)

    # Accumulate the per-tile scalar into the resident (1, 128) output block
    # (broadcast add; no (tn,1) masked-store accumulator traffic).
    out_ref[...] += jnp.sum(kl_row)

    # ---- finalize: fold in the T^2 / N scale once ----
    @pl.when(tile == n_tiles - 1)
    def _():
        out_ref[...] = out_ref[...] * jnp.float32(scale)


def kl_loss(pred, label, *, tn=None, exact_eps_log=True):
    """Pallas TPU implementation of KLLoss.forward(pred, label). Returns a scalar f32.

    `pred`/`label` may be f32, bf16 or f16; keep them in the narrow dtype if the caller
    already has it (the kernel upcasts internally), which halves HBM read traffic.
    Set exact_eps_log=False for the reduced-transcendental (compute-bound) path; it
    differs from the PyTorch reference only at the ~1e-7 eps / approx-reciprocal level.
    """
    assert pred.shape == label.shape and pred.ndim == 2
    n, c = pred.shape
    itemsize = jnp.dtype(pred.dtype).itemsize

    # ---- generation-aware VMEM budget ----
    try:
        vmem_cap = int(pltpu.get_tpu_info().vmem_capacity_bytes)
    except Exception:  # pragma: no cover - conservative fallback (safe on all gens)
        vmem_cap = 64 << 20
    budget = min(vmem_cap * 3 // 4, 100 << 20)

    def tile_bytes(rows):
        # 2 inputs x 2 pipeline buffers + ~3 f32 (rows, C) softmax intermediates + headroom.
        return 2 * 2 * rows * c * itemsize + 3 * rows * c * 4 + (1 << 20)

    # ---- row-tile size: bytes-per-tile target (~3 MiB per input block), 8-aligned ----
    if tn is None:
        tn = max(8, (3 << 20) // max(1, c * itemsize))
    tn = min(_round_up(int(tn), 8), _round_up(n, 8))
    while tn > 8 and tile_bytes(tn) > budget:
        tn = _round_up(tn // 2, 8)

    n_tiles = pl.cdiv(n, tn)
    # Never below the actual need (fixes the old min(.., 32 MiB) under-provisioning bug),
    # never above physical capacity.
    vmem_limit = int(min(max(tile_bytes(tn), 16 << 20), vmem_cap))

    kernel = functools.partial(
        _kl_loss_kernel,
        n_total=n, tn=tn, scale=_T * _T / n, exact_eps_log=exact_eps_log)

    out = pl.pallas_call(
        kernel,
        out_shape=jax.ShapeDtypeStruct((1, 128), jnp.float32),
        grid_spec=pltpu.PrefetchScalarGridSpec(
            num_scalar_prefetch=0,
            grid=(n_tiles,),
            in_specs=[
                pl.BlockSpec((tn, c), lambda i: (i, 0)),
                pl.BlockSpec((tn, c), lambda i: (i, 0)),
            ],
            out_specs=pl.BlockSpec((1, 128), lambda i: (0, 0)),
        ),
        compiler_params=pltpu.CompilerParams(
            dimension_semantics=("arbitrary",),
            vmem_limit_bytes=vmem_limit,
        ),
    )(pred, label)

    # The scalar loss was broadcast across the 128-lane output block; pick lane 0.
    return out[0, 0]


def kl_loss_ref(pred, label):
    """Pure-JAX reference for verification (mirrors the PyTorch module)."""
    T = 3.0
    predict = jax.nn.log_softmax(pred / T, axis=1)
    target = jax.nn.softmax(label / T, axis=1) + 1e-7
    return T * T * jnp.sum(target * (jnp.log(target) - predict)) / pred.shape[0]


if __name__ == "__main__":
    key = jax.random.PRNGKey(0)
    k1, k2 = jax.random.split(key)

    # Small shapes consistent with the module: batch of class-logit rows.
    N, C = 8, 32
    pred = jax.random.normal(k1, (N, C), dtype=jnp.float32)
    label = jax.random.normal(k2, (N, C), dtype=jnp.float32)

    out = kl_loss(pred, label)
    jax.block_until_ready(out)
    ref = kl_loss_ref(pred, label)
    assert jnp.allclose(out, ref, rtol=1e-5, atol=1e-5), (out, ref)

    # Ragged batch (N not a multiple of the row tile): exercises the no-pad masked
    # trailing block and the multi-tile accumulation path.
    N2 = 20
    pred2 = jax.random.normal(k1, (N2, C), dtype=jnp.float32)
    label2 = jax.random.normal(k2, (N2, C), dtype=jnp.float32)
    out2 = kl_loss(pred2, label2, tn=8)
    jax.block_until_ready(out2)
    ref2 = kl_loss_ref(pred2, label2)
    assert jnp.allclose(out2, ref2, rtol=1e-5, atol=1e-5), (out2, ref2)

    # Reduced-transcendental variant (compute-bound chips): parity only to ~eps /
    # approx-reciprocal level, so compare with a looser tolerance.
    out3 = kl_loss(pred2, label2, exact_eps_log=False)
    jax.block_until_ready(out3)
    assert jnp.allclose(out3, ref2, rtol=5e-3, atol=1e-3), (out3, ref2)

    print("KERNEL_OK")
</pallas_src>

<mosaic_0001>
module attributes {stable_mosaic.version = 11 : i64} {
  func.func @_kl_loss_kernel(%arg0: i32, %arg1: memref<8x32xf32, #tpu.memory_space<vmem>>, %arg2: memref<8x32xf32, #tpu.memory_space<vmem>>, %arg3: memref<1x128xf32, #tpu.memory_space<vmem>>) attributes {dimension_semantics = [#tpu.dimension_semantics<arbitrary>], iteration_bounds = array<i64: 1>, scalar_prefetch = 0 : i64, scratch_operands = 0 : i64, tpu.core_type = #tpu.core_type<tc>, window_params = [{transform_indices = @transform_0, window_bounds = array<i64: 8, 32>}, {transform_indices = @transform_1, window_bounds = array<i64: 8, 32>}, {pipeline_mode = #tpu.pipeline_mode<synchronous>, transform_indices = @transform_2, window_bounds = array<i64: 1, 128>}]} {
    %c0_i32 = arith.constant 0 : i32
    %0 = arith.cmpi eq, %arg0, %c0_i32 : i32
    %1 = arith.extui %0 : i1 to i32
    %c0_i32_0 = arith.constant 0 : i32
    %2 = arith.cmpi ne, %1, %c0_i32_0 : i32
    scf.if %2 {
      %cst_21 = arith.constant 0.000000e+00 : f32
      %56 = vector.broadcast %cst_21 : f32 to vector<1x128xf32>
      %c0_22 = arith.constant 0 : index
      %c0_23 = arith.constant 0 : index
      %57 = vector.load %arg3[%c0_22, %c0_23] : memref<1x128xf32, #tpu.memory_space<vmem>>, vector<1x128xf32>
      tpu.vector_store %arg3[%c0_22, %c0_23], %56 {strides = array<i32>} : memref<1x128xf32, #tpu.memory_space<vmem>>, vector<1x128xf32>,
    } else {
    }
    %c0 = arith.constant 0 : index
    %c0_1 = arith.constant 0 : index
    %3 = vector.load %arg1[%c0, %c0_1] : memref<8x32xf32, #tpu.memory_space<vmem>>, vector<8x32xf32>
    %cst = arith.constant 0.333333343 : f32
    %4 = vector.broadcast %cst : f32 to vector<8x32xf32>
    %5 = arith.mulf %3, %4 : vector<8x32xf32>
    %c0_2 = arith.constant 0 : index
    %c0_3 = arith.constant 0 : index
    %6 = vector.load %arg2[%c0_2, %c0_3] : memref<8x32xf32, #tpu.memory_space<vmem>>, vector<8x32xf32>
    %cst_4 = arith.constant 0.333333343 : f32
    %7 = vector.broadcast %cst_4 : f32 to vector<8x32xf32>
    %8 = arith.mulf %6, %7 : vector<8x32xf32>
    %cst_5 = arith.constant dense<0xFF800000> : vector<8xf32>
    %9 = vector.multi_reduction <maximumf>, %5, %cst_5 [1] : vector<8x32xf32> to vector<8xf32>
    %10 = vector.shape_cast %9 : vector<8xf32> to vector<8x1xf32>
    %11 = vector.broadcast %10 : vector<8x1xf32> to vector<8x32xf32>
    %12 = arith.subf %5, %11 : vector<8x32xf32>
    %13 = math.exp %12 : vector<8x32xf32>
    %cst_6 = arith.constant dense<0.000000e+00> : vector<8xf32>
    %14 = vector.multi_reduction <add>, %13, %cst_6 [1] : vector<8x32xf32> to vector<8xf32>
    %15 = vector.shape_cast %14 : vector<8xf32> to vector<8x1xf32>
    %16 = math.log %15 : vector<8x1xf32>
    %17 = vector.broadcast %16 : vector<8x1xf32> to vector<8x32xf32>
    %18 = arith.subf %12, %17 : vector<8x32xf32>
    %cst_7 = arith.constant dense<0xFF800000> : vector<8xf32>
    %19 = vector.multi_reduction <maximumf>, %8, %cst_7 [1] : vector<8x32xf32> to vector<8xf32>
    %20 = vector.shape_cast %19 : vector<8xf32> to vector<8x1xf32>
    %21 = vector.broadcast %20 : vector<8x1xf32> to vector<8x32xf32>
    %22 = arith.subf %8, %21 : vector<8x32xf32>
    %23 = math.exp %22 : vector<8x32xf32>
    %cst_8 = arith.constant dense<0.000000e+00> : vector<8xf32>
    %24 = vector.multi_reduction <add>, %23, %cst_8 [1] : vector<8x32xf32> to vector<8xf32>
    %25 = vector.shape_cast %24 : vector<8xf32> to vector<8x1xf32>
    %cst_9 = arith.constant 1.000000e+00 : f32
    %26 = vector.broadcast %cst_9 : f32 to vector<8x1xf32>
    %27 = arith.divf %26, %25 : vector<8x1xf32>
    %28 = vector.broadcast %27 : vector<8x1xf32> to vector<8x32xf32>
    %29 = arith.mulf %23, %28 : vector<8x32xf32>
    %cst_10 = arith.constant 1.000000e-07 : f32
    %30 = vector.broadcast %cst_10 : f32 to vector<8x32xf32>
    %31 = arith.addf %29, %30 : vector<8x32xf32>
    %32 = math.log %31 : vector<8x32xf32>
    %33 = arith.subf %32, %18 : vector<8x32xf32>
    %34 = arith.mulf %31, %33 : vector<8x32xf32>
    %cst_11 = arith.constant dense<0.000000e+00> : vector<8xf32>
    %35 = vector.multi_reduction <add>, %34, %cst_11 [1] : vector<8x32xf32> to vector<8xf32>
    %36 = vector.shape_cast %35 : vector<8xf32> to vector<8x1xf32>
    %c8_i32 = arith.constant 8 : i32
    %37 = arith.muli %arg0, %c8_i32 : i32
    %38 = tpu.iota {dimensions = array<i32: 0>} : vector<8x1xi32>
    %39 = vector.broadcast %37 : i32 to vector<8x1xi32>
    %40 = arith.addi %39, %38 : vector<8x1xi32>
    %c8_i32_12 = arith.constant 8 : i32
    %41 = vector.broadcast %c8_i32_12 : i32 to vector<8x1xi32>
    %42 = arith.cmpi slt, %40, %41 : vector<8x1xi32>
    %cst_13 = arith.constant 0.000000e+00 : f32
    %43 = vector.broadcast %cst_13 : f32 to vector<8x1xf32>
    %44 = arith.select %42, %36, %43 : vector<8x1xi1>, vector<8x1xf32>
    %c0_14 = arith.constant 0 : index
    %c0_15 = arith.constant 0 : index
    %45 = vector.load %arg3[%c0_14, %c0_15] : memref<1x128xf32, #tpu.memory_space<vmem>>, vector<1x128xf32>
    %46 = vector.shape_cast %44 : vector<8x1xf32> to vector<1x8x1xf32>
    %cst_16 = arith.constant dense<0.000000e+00> : vector<1xf32>
    %47 = vector.multi_reduction <add>, %46, %cst_16 [1, 2] : vector<1x8x1xf32> to vector<1xf32>
    %48 = vector.shape_cast %47 : vector<1xf32> to vector<1x1x1xf32>
    %49 = vector.extract %48[0, 0, 0] : f32 from vector<1x1x1xf32>
    %50 = vector.broadcast %49 : f32 to vector<1x128xf32>
    %51 = arith.addf %45, %50 : vector<1x128xf32>
    %c0_17 = arith.constant 0 : index
    %c0_18 = arith.constant 0 : index
    %52 = vector.load %arg3[%c0_17, %c0_18] : memref<1x128xf32, #tpu.memory_space<vmem>>, vector<1x128xf32>
    tpu.vector_store %arg3[%c0_17, %c0_18], %51 {strides = array<i32>} : memref<1x128xf32, #tpu.memory_space<vmem>>, vector<1x128xf32>,
    %c0_i32_19 = arith.constant 0 : i32
    %53 = arith.cmpi eq, %arg0, %c0_i32_19 : i32
    %54 = arith.extui %53 : i1 to i32
    %c0_i32_20 = arith.constant 0 : i32
    %55 = arith.cmpi ne, %54, %c0_i32_20 : i32
    scf.if %55 {
      %c0_21 = arith.constant 0 : index
      %c0_22 = arith.constant 0 : index
      %56 = vector.load %arg3[%c0_21, %c0_22] : memref<1x128xf32, #tpu.memory_space<vmem>>, vector<1x128xf32>
      %cst_23 = arith.constant 1.125000e+00 : f32
      %57 = vector.broadcast %cst_23 : f32 to vector<1x128xf32>
      %58 = arith.mulf %56, %57 : vector<1x128xf32>
      %c0_24 = arith.constant 0 : index
      %c0_25 = arith.constant 0 : index
      %59 = vector.load %arg3[%c0_24, %c0_25] : memref<1x128xf32, #tpu.memory_space<vmem>>, vector<1x128xf32>
      tpu.vector_store %arg3[%c0_24, %c0_25], %58 {strides = array<i32>} : memref<1x128xf32, #tpu.memory_space<vmem>>, vector<1x128xf32>,
    } else {
    }
    return
  }
  func.func @transform_0(%arg0: i32) -> (i32, i32) {
    %c0_i32 = arith.constant 0 : i32
    %c0_i32_0 = arith.constant 0 : i32
    return %arg0, %c0_i32 : i32, i32
  }
  func.func @transform_1(%arg0: i32) -> (i32, i32) {
    %c0_i32 = arith.constant 0 : i32
    %c0_i32_0 = arith.constant 0 : i32
    return %arg0, %c0_i32 : i32, i32
  }
  func.func @transform_2(%arg0: i32) -> (i32, i32) {
    %c0_i32 = arith.constant 0 : i32
    %c0_i32_0 = arith.constant 0 : i32
    %c0_i32_1 = arith.constant 0 : i32
    return %c0_i32, %c0_i32_0 : i32, i32
  }
}

</mosaic_0001>

<llo_original>
// kernel: tpu_custom_call.1
$region0: #{tpu_custom_call.1}
  #allocation0 [shape = 'u32[]', space=smem, size = 0x4, offset = 0x4, fixed_abs, tag = 'smem constant byte address 0x4 - core index']
  #allocation1 [shape = 'u32[144,128]{1,0:T(1,128)}', space=vmem, size = 0x12000, scoped, tag = 'internal scratch']
  %s0 = inlined_call_operand.hbm [shape: f32[8,32], index: 0, kind: input, shape index: {}]
  %s1 = inlined_call_operand.hbm [shape: f32[8,32], index: 1, kind: input, shape index: {}]
  %s2 = inlined_call_operand.hbm [shape: f32[1,128], index: 2, kind: output, shape index: {}]
  %s3 = sld [smem:[#allocation0]]
  $region34: #{tpu_custom_call.1} parent=0
    _
  %s5 = ssub.s32 1, %s3
  %s6 = scalar_select 0, %s5, %s3
  $region1: #{tpu_custom_call.1} parent=0
    #allocation2 [shape = 'u8[4096]{0}', space=vmem, size = 0x1000, scoped, tag = 'input window, operand 0, single buffered']
    #allocation3 [shape = 's32[1]{0}', space=sflag, size = 0x4, scoped, tag = 'scoped memory for tpu_custom_call.1']
    #allocation4 [shape = 's32[1]{0}', space=sflag, size = 0x4, scoped, tag = 'scoped memory for tpu_custom_call.1']
    #allocation5 [shape = 'u8[4096]{0}', space=vmem, size = 0x1000, scoped, tag = 'input window, operand 1, single buffered']
    #allocation6 [shape = 's32[1]{0}', space=sflag, size = 0x4, scoped, tag = 'scoped memory for tpu_custom_call.1']
    #allocation7 [shape = 'u8[512]{0}', space=vmem, size = 0x400, scoped, tag = 'output window, operand 0, single buffered']
    %7 = vsyncpa [#allocation3], 0
    %8 = vsyncpa [#allocation6], 0
    %9 = vsyncpa [#allocation4], 0
    // Predicated region
    $region2: #{tpu_custom_call.1} parent=1 // pred_check
      _
    $region3: #{tpu_custom_call.1} parent=1 // pred_check_branch
      %11 = sbr.rel (0) target = $region5
    $region4: #{tpu_custom_call.1} parent=1 // pred_region
      %s13 = ssub.s32 128, 128
      %14 = vsyncadd [#allocation3], %s13
      %s16 = sshll.u32 [#allocation2], 4
      %s17 = int_to_ptr.vmem [resolvable:$true] %s16
      %19 = dma.hbm_to_vmem [thread:$0]  %s0, 128, %s17, [#allocation3]
    $region5: #{tpu_custom_call.1} parent=1 // pred_fallthru
      _
    // Predicated region
    $region6: #{tpu_custom_call.1} parent=1 // pred_check
      _
    $region7: #{tpu_custom_call.1} parent=1 // pred_check_branch
      %21 = sbr.rel (0) target = $region9
    $region8: #{tpu_custom_call.1} parent=1 // pred_region
      %s23 = ssub.s32 128, 128
      %24 = vsyncadd [#allocation6], %s23
      %s26 = sshll.u32 [#allocation5], 4
      %s27 = int_to_ptr.vmem [resolvable:$true] %s26
      %29 = dma.hbm_to_vmem [thread:$0]  %s1, 128, %s27, [#allocation6]
    $region9: #{tpu_custom_call.1} parent=1 // pred_fallthru
      _
    // Predicated region
    $region10: #{tpu_custom_call.1} parent=1 // pred_check
      _
    $region11: #{tpu_custom_call.1} parent=1 // pred_check_branch
      %31 = sbr.rel (0) target = $region13
    $region12: #{tpu_custom_call.1} parent=1 // pred_region
      %32 = dma.done [#allocation3], 128
    $region13: #{tpu_custom_call.1} parent=1 // pred_fallthru
      _
    // Predicated region
    $region14: #{tpu_custom_call.1} parent=1 // pred_check
      _
    $region15: #{tpu_custom_call.1} parent=1 // pred_check_branch
      %34 = sbr.rel (0) target = $region17
    $region16: #{tpu_custom_call.1} parent=1 // pred_region
      %35 = dma.done [#allocation6], 128
    $region17: #{tpu_custom_call.1} parent=1 // pred_fallthru
      _
    %p36 = scmp.eq.s32.totalorder 0, 0
    // Predicated region
    $region18: #{tpu_custom_call.1} parent=1 // pred_check
      %p37 = pneg %p36
    $region19: #{tpu_custom_call.1} parent=1 // pred_check_branch
      %39 = sbr.rel (%p37) target = $region21
    $region20: #{tpu_custom_call.1} parent=1 // pred_region
      %40 = vst [vmem:[#allocation7] sm:$0x1] 0.0
    $region21: #{tpu_custom_call.1} parent=1 // pred_fallthru
      _
    %v41 = vld [vmem:[#allocation2] sm:$0xff]
    %v42 = vmul.f32 %v41, 0.33333334
    %v43 = vld [vmem:[#allocation5] sm:$0xff]
    %v44 = vmul.f32 %v43, 0.33333334
    %vm45 = vcmask 261120
    %v46 = vsel %vm45, %v42, -inf
    %47 = vmax.xlane.f32.xlu0 %v46
    %v48 = vpop.xlane.xlu0 %47
    %v49 = vsub.f32 %v42, %v48
    %v50 = vmul.f32 %v49, 1.442695
    %v51 = vpow.pop %v50
    %v52 = vsel %vm45, %v51, 0.0
    %53 = vadd.xlane.f32.xlu0 %v52
    %v54 = vpop.xlane.xlu0 %53
    %v55 = vlog2.pop %v54
    %v56 = vmul.f32 %v55, 0.6931472
    %v57 = vsub.f32 %v49, %v56
    %v58 = vsel %vm45, %v44, -inf
    %59 = vmax.xlane.f32.xlu0 %v58
    %v60 = vpop.xlane.xlu0 %59
    %v61 = vsub.f32 %v44, %v60
    %v62 = vmul.f32 %v61, 1.442695
    %v63 = vpow.pop %v62
    %v64 = vsel %vm45, %v63, 0.0
    %65 = vadd.xlane.f32.xlu0 %v64
    %v66 = vpop.xlane.xlu0 %65
    %v67 = vrcp.pop %v66
    %v68 = vmul.f32 1.0, %v67
    %v69 = vmul.f32 %v63, %v68
    %v70 = vadd.f32 %v69, 1e-07
    %v71 = vlog2.pop %v70
    %v72 = vmul.f32 %v71, 0.6931472
    %v73 = vsub.f32 %v72, %v57
    %v74 = vmul.f32 %v70, %v73
    %v75 = vsel %vm45, %v74, 0.0
    %76 = vadd.xlane.f32.xlu0 %v75
    %v77 = vpop.xlane.xlu0 %76
    %s78 = smul.u32 0, 8
    %v79 = vlaneseq
    %v80 = vshrl.u32 %v79, 7
    %v81 = vstv %s78
    %v82 = vadd.s32 %v81, %v80
    %vm83 = vcmp.lt.s32.totalorder %v82, 8
    %v84 = vsel %vm83, %v77, 0.0
    %v85 = vld [vmem:[#allocation7] sm:$0x1]
    %vm86 = vcmask 7168
    %v87 = vsel %vm86, %v84, 0.0
    %88 = vadd.xlane.f32.xlu0 %v87
    %v89 = vpop.xlane.xlu0 %88
    %v90 = vrot.slane %v89, 4
    %v91 = vadd.f32 %v89, %v90
    %v92 = vrot.slane %v91, 2
    %v93 = vadd.f32 %v91, %v92
    %v94 = vrot.slane %v93, 1
    %v95 = vadd.f32 %v93, %v94
    %s96 = vtos %v95
    %v97 = vstv %s96
    %v98 = vadd.f32 %v85, %v97
    %99 = vst [vmem:[#allocation7] sm:$0x1] %v98
    // Predicated region
    $region22: #{tpu_custom_call.1} parent=1 // pred_check
      %p100 = pneg %p36
    $region23: #{tpu_custom_call.1} parent=1 // pred_check_branch
      %102 = sbr.rel (%p100) target = $region25
    $region24: #{tpu_custom_call.1} parent=1 // pred_region
      %v103 = vld [vmem:[#allocation7] sm:$0x1]
      %v104 = vmul.f32 %v103, 1.125
      %105 = vst [vmem:[#allocation7] sm:$0x1] %v104
    $region25: #{tpu_custom_call.1} parent=1 // pred_fallthru
      _
    // Predicated region
    $region26: #{tpu_custom_call.1} parent=1 // pred_check
      _
    $region27: #{tpu_custom_call.1} parent=1 // pred_check_branch
      %107 = sbr.rel (0) target = $region29
    $region28: #{tpu_custom_call.1} parent=1 // pred_region
      %s109 = ssub.s32 16, 16
      %110 = vsyncadd [#allocation4], %s109
      %s112 = sshll.u32 [#allocation7], 4
      %s113 = int_to_ptr.vmem [resolvable:$true] %s112
      %115 = dma.vmem_to_hbm [thread:$0]  %s113, 16, %s2, [#allocation4]
    $region29: #{tpu_custom_call.1} parent=1 // pred_fallthru
      _
    // Predicated region
    $region30: #{tpu_custom_call.1} parent=1 // pred_check
      _
    $region31: #{tpu_custom_call.1} parent=1 // pred_check_branch
      %117 = sbr.rel (0) target = $region33
    $region32: #{tpu_custom_call.1} parent=1 // pred_region
      %118 = dma.done [#allocation4], 16
    $region33: #{tpu_custom_call.1} parent=1 // pred_fallthru
      _
    %119 = vsyncpa [#allocation3], 1
    %120 = vsyncpa [#allocation6], 1
    %121 = vsyncpa [#allocation4], 1

</llo_original>
